<compile_context>
chip_gen: v6e
topology: v6e:2x2x1
jax: 0.10.0
libtpu: 0.0.40
codegen_flags: <defaults>
</compile_context>

<pallas_src>
import jax
import jax.numpy as jnp
from jax import lax
from jax.experimental import pallas as pl
from jax.experimental.pallas import tpu as pltpu


def _lstm_manifest_kernel(x_ref, wih_ref, whh_ref, bias_ref, h0_ref, c0_ref,
                          h_out_ref, c_out_ref, trace_ref):
    """Whole recurrence in one grid point.

    x_ref    : (B, H)   controller input (same for every manifestation).
    wih_ref  : (H, 4H)  W_ih^T, gate order i,f,g,o along the lane axis.
    whh_ref  : (H, 4H)  W_hh^T, same layout.
    bias_ref : (1, 4H)  b_ih + b_hh.
    h0/c0    : (B, H)   initial hidden state (loop-carry init).
    h_out/c_out : (B, H) final hidden state.
    trace_ref: (N, B, H) per-manifestation trace (h after each step).
    """
    n_steps = trace_ref.shape[0]
    H = h0_ref.shape[-1]

    # One-time, loop-invariant input projection, fused & lane-dense: (B, 4H).
    xg = jnp.dot(x_ref[...], wih_ref[...],
                 preferred_element_type=jnp.float32) + bias_ref[...]
    # Hoisted recurrent-weight load (loop-invariant).
    whh = whh_ref[...]

    def step(t, carry):
        h, c = carry

        # Single fused lane-dense recurrent matmul: (B,H) x (H,4H) -> (B,4H).
        gates = xg + jnp.dot(h, whh, preferred_element_type=jnp.float32)

        # Two full-vreg transcendental pushes; gate extraction via static
        # lane slices (XLU slot is idle, so this is effectively free).
        sg = jax.nn.sigmoid(gates)
        th = jnp.tanh(gates)
        i_g = sg[:, 0 * H:1 * H]
        f_g = sg[:, 1 * H:2 * H]
        g_g = th[:, 2 * H:3 * H]
        o_g = sg[:, 3 * H:4 * H]

        c_new = f_g * c + i_g * g_g
        h_new = o_g * jnp.tanh(c_new)

        # VMEM-resident output; the HBM writeback is one DMA at kernel end.
        trace_ref[t] = h_new
        return h_new, c_new

    # Steps are data-dependent; cap unroll so large N does not bloat i-mem.
    unroll = max(1, min(n_steps, 8))
    h_fin, c_fin = lax.fori_loop(
        0, n_steps, step, (h0_ref[...], c0_ref[...]), unroll=unroll)

    h_out_ref[...] = h_fin
    c_out_ref[...] = c_fin


def search_space_manifestation(x, h0, c0, w_ih, w_hh, b_ih, b_hh,
                               num_manifestations):
    """Pallas implementation of _SearchSpaceManifestation.forward.

    Args:
      x:     (B, H)  controller input (same input fed to every manifestation).
      h0,c0: (B, H)  initial hidden state.
      w_ih:  (4H, H) PyTorch-layout input weights  (gate order i,f,g,o).
      w_hh:  (4H, H) PyTorch-layout recurrent weights.
      b_ih, b_hh: (4H,) biases.
      num_manifestations: number of node manifestations.

    Returns:
      (history, (h, c), full_trace) with full_trace shape (N, B, H).
    """
    B, H = x.shape
    N = int(num_manifestations)

    x = jnp.asarray(x, jnp.float32)
    h0 = jnp.asarray(h0, jnp.float32)
    c0 = jnp.asarray(c0, jnp.float32)

    # Tiny layout-only preps (no matmul, no HBM round-trip of activations):
    wih_t = jnp.asarray(w_ih, jnp.float32).T           # (H, 4H) lane-dense
    whh_t = jnp.asarray(w_hh, jnp.float32).T           # (H, 4H) lane-dense
    bias = (jnp.asarray(b_ih, jnp.float32)
            + jnp.asarray(b_hh, jnp.float32)).reshape(1, 4 * H)

    flops = 2 * B * H * 4 * H * (N + 1) + N * 10 * B * H
    transcendentals = N * (2 * B * 4 * H + B * H)
    bytes_accessed = 4 * (B * H * 3 + 2 * H * 4 * H + 4 * H
                          + 2 * B * H + N * B * H)

    h_out, c_out, trace = pl.pallas_call(
        _lstm_manifest_kernel,
        out_shape=(
            jax.ShapeDtypeStruct((B, H), jnp.float32),
            jax.ShapeDtypeStruct((B, H), jnp.float32),
            jax.ShapeDtypeStruct((N, B, H), jnp.float32),
        ),
        grid_spec=pltpu.PrefetchScalarGridSpec(
            num_scalar_prefetch=0,
            grid=(1,),
            in_specs=[
                pl.BlockSpec((B, H), lambda i: (0, 0)),          # x
                pl.BlockSpec((H, 4 * H), lambda i: (0, 0)),      # W_ih^T
                pl.BlockSpec((H, 4 * H), lambda i: (0, 0)),      # W_hh^T
                pl.BlockSpec((1, 4 * H), lambda i: (0, 0)),      # bias
                pl.BlockSpec((B, H), lambda i: (0, 0)),          # h0
                pl.BlockSpec((B, H), lambda i: (0, 0)),          # c0
            ],
            out_specs=[
                pl.BlockSpec((B, H), lambda i: (0, 0)),          # h
                pl.BlockSpec((B, H), lambda i: (0, 0)),          # c
                pl.BlockSpec((N, B, H), lambda i: (0, 0, 0)),    # full trace
            ],
        ),
        compiler_params=pltpu.CompilerParams(
            dimension_semantics=("arbitrary",)),
        cost_estimate=pl.CostEstimate(
            flops=flops,
            transcendentals=transcendentals,
            bytes_accessed=bytes_accessed),
    )(x, wih_t, whh_t, bias, h0, c0)

    history = h_out
    return history, (h_out, c_out), trace


def _reference(x, h0, c0, w_ih, w_hh, b_ih, b_hh, n):
    """Pure-JAX reference of the same recurrence (PyTorch LSTMCell semantics)."""
    h, c = h0, c0
    traces = []
    for _ in range(n):
        gates = x @ w_ih.T + b_ih + h @ w_hh.T + b_hh
        H = h.shape[-1]
        i = jax.nn.sigmoid(gates[:, 0 * H:1 * H])
        f = jax.nn.sigmoid(gates[:, 1 * H:2 * H])
        g = jnp.tanh(gates[:, 2 * H:3 * H])
        o = jax.nn.sigmoid(gates[:, 3 * H:4 * H])
        c = f * c + i * g
        h = o * jnp.tanh(c)
        traces.append(h)
    return h, (h, c), jnp.stack(traces, axis=0)


if __name__ == "__main__":
    # B=8 fills vreg sublanes / MXU rows (batching is the biggest throughput
    # lever for the controller); H=32 -> 4H=128 lane-dense gate vector.
    B, H, N = 8, 32, 3  # batch, hidden, number of node manifestations

    key = jax.random.PRNGKey(0)
    k = jax.random.split(key, 7)
    bound = 1.0 / (H ** 0.5)
    x = jax.random.normal(k[0], (B, H), jnp.float32)
    h0 = jax.random.normal(k[1], (B, H), jnp.float32)
    c0 = jax.random.normal(k[2], (B, H), jnp.float32)
    w_ih = jax.random.uniform(k[3], (4 * H, H), jnp.float32, -bound, bound)
    w_hh = jax.random.uniform(k[4], (4 * H, H), jnp.float32, -bound, bound)
    b_ih = jax.random.uniform(k[5], (4 * H,), jnp.float32, -bound, bound)
    b_hh = jax.random.uniform(k[6], (4 * H,), jnp.float32, -bound, bound)

    history, (h, c), full_trace = search_space_manifestation(
        x, h0, c0, w_ih, w_hh, b_ih, b_hh, N)
    jax.block_until_ready((history, h, c, full_trace))

    # Correctness check against pure-JAX reference.
    r_hist, (r_h, r_c), r_trace = _reference(x, h0, c0, w_ih, w_hh, b_ih, b_hh, N)
    assert jnp.allclose(history, r_hist, atol=1e-4, rtol=1e-4)
    assert jnp.allclose(h, r_h, atol=1e-4, rtol=1e-4)
    assert jnp.allclose(c, r_c, atol=1e-4, rtol=1e-4)
    assert jnp.allclose(full_trace, r_trace, atol=1e-4, rtol=1e-4)

    print("KERNEL_OK")
</pallas_src>

<mosaic_0001>
module attributes {stable_mosaic.version = 11 : i64} {
  func.func @_lstm_manifest_kernel(%arg0: i32, %arg1: memref<8x32xf32, #tpu.memory_space<vmem>>, %arg2: memref<32x128xf32, #tpu.memory_space<vmem>>, %arg3: memref<32x128xf32, #tpu.memory_space<vmem>>, %arg4: memref<1x128xf32, #tpu.memory_space<vmem>>, %arg5: memref<8x32xf32, #tpu.memory_space<vmem>>, %arg6: memref<8x32xf32, #tpu.memory_space<vmem>>, %arg7: memref<8x32xf32, #tpu.memory_space<vmem>>, %arg8: memref<8x32xf32, #tpu.memory_space<vmem>>, %arg9: memref<3x8x32xf32, #tpu.memory_space<vmem>>) attributes {dimension_semantics = [#tpu.dimension_semantics<arbitrary>], iteration_bounds = array<i64: 1>, scalar_prefetch = 0 : i64, scratch_operands = 0 : i64, tpu.core_type = #tpu.core_type<tc>, window_params = [{pipeline_mode = #tpu.pipeline_mode<synchronous>, transform_indices = @transform_0, window_bounds = array<i64: 8, 32>}, {pipeline_mode = #tpu.pipeline_mode<synchronous>, transform_indices = @transform_1, window_bounds = array<i64: 32, 128>}, {pipeline_mode = #tpu.pipeline_mode<synchronous>, transform_indices = @transform_2, window_bounds = array<i64: 32, 128>}, {pipeline_mode = #tpu.pipeline_mode<synchronous>, transform_indices = @transform_3, window_bounds = array<i64: 1, 128>}, {pipeline_mode = #tpu.pipeline_mode<synchronous>, transform_indices = @transform_4, window_bounds = array<i64: 8, 32>}, {pipeline_mode = #tpu.pipeline_mode<synchronous>, transform_indices = @transform_5, window_bounds = array<i64: 8, 32>}, {pipeline_mode = #tpu.pipeline_mode<synchronous>, transform_indices = @transform_6, window_bounds = array<i64: 8, 32>}, {pipeline_mode = #tpu.pipeline_mode<synchronous>, transform_indices = @transform_7, window_bounds = array<i64: 8, 32>}, {pipeline_mode = #tpu.pipeline_mode<synchronous>, transform_indices = @transform_8, window_bounds = array<i64: 3, 8, 32>}]} {
    %c0 = arith.constant 0 : index
    %c0_0 = arith.constant 0 : index
    %0 = vector.load %arg1[%c0, %c0_0] : memref<8x32xf32, #tpu.memory_space<vmem>>, vector<8x32xf32>
    %c0_1 = arith.constant 0 : index
    %c0_2 = arith.constant 0 : index
    %1 = vector.load %arg2[%c0_1, %c0_2] : memref<32x128xf32, #tpu.memory_space<vmem>>, vector<32x128xf32>
    %cst = arith.constant dense<0.000000e+00> : vector<8x128xf32>
    %2 = tpu.matmul %0, %1, %cst {dimension_numbers = #tpu.dot_dimension_numbers<[1], [0], [0], [1], [0, 0, 1, 1], [], []>} : vector<8x32xf32>, vector<32x128xf32>, vector<8x128xf32> -> vector<8x128xf32>
    %c0_3 = arith.constant 0 : index
    %c0_4 = arith.constant 0 : index
    %3 = vector.load %arg4[%c0_3, %c0_4] : memref<1x128xf32, #tpu.memory_space<vmem>>, vector<1x128xf32>
    %4 = vector.broadcast %3 : vector<1x128xf32> to vector<8x128xf32>
    %5 = arith.addf %2, %4 : vector<8x128xf32>
    %c0_5 = arith.constant 0 : index
    %c0_6 = arith.constant 0 : index
    %6 = vector.load %arg3[%c0_5, %c0_6] : memref<32x128xf32, #tpu.memory_space<vmem>>, vector<32x128xf32>
    %c0_7 = arith.constant 0 : index
    %c0_8 = arith.constant 0 : index
    %7 = vector.load %arg5[%c0_7, %c0_8] : memref<8x32xf32, #tpu.memory_space<vmem>>, vector<8x32xf32>
    %c0_9 = arith.constant 0 : index
    %c0_10 = arith.constant 0 : index
    %8 = vector.load %arg6[%c0_9, %c0_10] : memref<8x32xf32, #tpu.memory_space<vmem>>, vector<8x32xf32>
    %c0_i32 = arith.constant 0 : i32
    %cst_11 = arith.constant dense<0.000000e+00> : vector<8x128xf32>
    %9 = tpu.matmul %7, %6, %cst_11 {dimension_numbers = #tpu.dot_dimension_numbers<[1], [0], [0], [1], [0, 0, 1, 1], [], []>} : vector<8x32xf32>, vector<32x128xf32>, vector<8x128xf32> -> vector<8x128xf32>
    %10 = arith.addf %5, %9 : vector<8x128xf32>
    %11 = arith.negf %10 : vector<8x128xf32>
    %12 = math.exp %11 : vector<8x128xf32>
    %cst_12 = arith.constant 1.000000e+00 : f32
    %13 = vector.broadcast %cst_12 : f32 to vector<8x128xf32>
    %14 = arith.addf %13, %12 : vector<8x128xf32>
    %15 = arith.divf %13, %14 : vector<8x128xf32>
    %16 = math.tanh %10 : vector<8x128xf32>
    %17 = vector.extract_strided_slice %15 {offsets = [0, 0], sizes = [8, 32], strides = [1, 1]} : vector<8x128xf32> to vector<8x32xf32>
    %18 = vector.extract_strided_slice %15 {offsets = [0, 32], sizes = [8, 32], strides = [1, 1]} : vector<8x128xf32> to vector<8x32xf32>
    %19 = vector.extract_strided_slice %16 {offsets = [0, 64], sizes = [8, 32], strides = [1, 1]} : vector<8x128xf32> to vector<8x32xf32>
    %20 = vector.extract_strided_slice %15 {offsets = [0, 96], sizes = [8, 32], strides = [1, 1]} : vector<8x128xf32> to vector<8x32xf32>
    %21 = arith.mulf %18, %8 : vector<8x32xf32>
    %22 = arith.mulf %17, %19 : vector<8x32xf32>
    %23 = arith.addf %21, %22 : vector<8x32xf32>
    %24 = math.tanh %23 : vector<8x32xf32>
    %25 = arith.mulf %20, %24 : vector<8x32xf32>
    %26 = arith.index_cast %c0_i32 : i32 to index
    %c0_13 = arith.constant 0 : index
    %c0_14 = arith.constant 0 : index
    %27 = vector.load %arg9[%26, %c0_13, %c0_14] : memref<3x8x32xf32, #tpu.memory_space<vmem>>, vector<1x8x32xf32>
    %28 = vector.shape_cast %27 : vector<1x8x32xf32> to vector<8x32xf32>
    %29 = vector.shape_cast %25 : vector<8x32xf32> to vector<1x8x32xf32>
    tpu.vector_store %arg9[%26, %c0_13, %c0_14], %29 {strides = array<i32>} : memref<3x8x32xf32, #tpu.memory_space<vmem>>, vector<1x8x32xf32>,
    %c1_i32 = arith.constant 1 : i32
    %cst_15 = arith.constant dense<0.000000e+00> : vector<8x128xf32>
    %30 = tpu.matmul %25, %6, %cst_15 {dimension_numbers = #tpu.dot_dimension_numbers<[1], [0], [0], [1], [0, 0, 1, 1], [], []>} : vector<8x32xf32>, vector<32x128xf32>, vector<8x128xf32> -> vector<8x128xf32>
    %31 = arith.addf %5, %30 : vector<8x128xf32>
    %32 = arith.negf %31 : vector<8x128xf32>
    %33 = math.exp %32 : vector<8x128xf32>
    %cst_16 = arith.constant 1.000000e+00 : f32
    %34 = vector.broadcast %cst_16 : f32 to vector<8x128xf32>
    %35 = arith.addf %34, %33 : vector<8x128xf32>
    %36 = arith.divf %34, %35 : vector<8x128xf32>
    %37 = math.tanh %31 : vector<8x128xf32>
    %38 = vector.extract_strided_slice %36 {offsets = [0, 0], sizes = [8, 32], strides = [1, 1]} : vector<8x128xf32> to vector<8x32xf32>
    %39 = vector.extract_strided_slice %36 {offsets = [0, 32], sizes = [8, 32], strides = [1, 1]} : vector<8x128xf32> to vector<8x32xf32>
    %40 = vector.extract_strided_slice %37 {offsets = [0, 64], sizes = [8, 32], strides = [1, 1]} : vector<8x128xf32> to vector<8x32xf32>
    %41 = vector.extract_strided_slice %36 {offsets = [0, 96], sizes = [8, 32], strides = [1, 1]} : vector<8x128xf32> to vector<8x32xf32>
    %42 = arith.mulf %39, %23 : vector<8x32xf32>
    %43 = arith.mulf %38, %40 : vector<8x32xf32>
    %44 = arith.addf %42, %43 : vector<8x32xf32>
    %45 = math.tanh %44 : vector<8x32xf32>
    %46 = arith.mulf %41, %45 : vector<8x32xf32>
    %47 = arith.index_cast %c1_i32 : i32 to index
    %c0_17 = arith.constant 0 : index
    %c0_18 = arith.constant 0 : index
    %48 = vector.load %arg9[%47, %c0_17, %c0_18] : memref<3x8x32xf32, #tpu.memory_space<vmem>>, vector<1x8x32xf32>
    %49 = vector.shape_cast %48 : vector<1x8x32xf32> to vector<8x32xf32>
    %50 = vector.shape_cast %46 : vector<8x32xf32> to vector<1x8x32xf32>
    tpu.vector_store %arg9[%47, %c0_17, %c0_18], %50 {strides = array<i32>} : memref<3x8x32xf32, #tpu.memory_space<vmem>>, vector<1x8x32xf32>,
    %c2_i32 = arith.constant 2 : i32
    %cst_19 = arith.constant dense<0.000000e+00> : vector<8x128xf32>
    %51 = tpu.matmul %46, %6, %cst_19 {dimension_numbers = #tpu.dot_dimension_numbers<[1], [0], [0], [1], [0, 0, 1, 1], [], []>} : vector<8x32xf32>, vector<32x128xf32>, vector<8x128xf32> -> vector<8x128xf32>
    %52 = arith.addf %5, %51 : vector<8x128xf32>
    %53 = arith.negf %52 : vector<8x128xf32>
    %54 = math.exp %53 : vector<8x128xf32>
    %cst_20 = arith.constant 1.000000e+00 : f32
    %55 = vector.broadcast %cst_20 : f32 to vector<8x128xf32>
    %56 = arith.addf %55, %54 : vector<8x128xf32>
    %57 = arith.divf %55, %56 : vector<8x128xf32>
    %58 = math.tanh %52 : vector<8x128xf32>
    %59 = vector.extract_strided_slice %57 {offsets = [0, 0], sizes = [8, 32], strides = [1, 1]} : vector<8x128xf32> to vector<8x32xf32>
    %60 = vector.extract_strided_slice %57 {offsets = [0, 32], sizes = [8, 32], strides = [1, 1]} : vector<8x128xf32> to vector<8x32xf32>
    %61 = vector.extract_strided_slice %58 {offsets = [0, 64], sizes = [8, 32], strides = [1, 1]} : vector<8x128xf32> to vector<8x32xf32>
    %62 = vector.extract_strided_slice %57 {offsets = [0, 96], sizes = [8, 32], strides = [1, 1]} : vector<8x128xf32> to vector<8x32xf32>
    %63 = arith.mulf %60, %44 : vector<8x32xf32>
    %64 = arith.mulf %59, %61 : vector<8x32xf32>
    %65 = arith.addf %63, %64 : vector<8x32xf32>
    %66 = math.tanh %65 : vector<8x32xf32>
    %67 = arith.mulf %62, %66 : vector<8x32xf32>
    %68 = arith.index_cast %c2_i32 : i32 to index
    %c0_21 = arith.constant 0 : index
    %c0_22 = arith.constant 0 : index
    %69 = vector.load %arg9[%68, %c0_21, %c0_22] : memref<3x8x32xf32, #tpu.memory_space<vmem>>, vector<1x8x32xf32>
    %70 = vector.shape_cast %69 : vector<1x8x32xf32> to vector<8x32xf32>
    %71 = vector.shape_cast %67 : vector<8x32xf32> to vector<1x8x32xf32>
    tpu.vector_store %arg9[%68, %c0_21, %c0_22], %71 {strides = array<i32>} : memref<3x8x32xf32, #tpu.memory_space<vmem>>, vector<1x8x32xf32>,
    %c3_i32 = arith.constant 3 : i32
    %c0_23 = arith.constant 0 : index
    %c0_24 = arith.constant 0 : index
    %72 = vector.load %arg7[%c0_23, %c0_24] : memref<8x32xf32, #tpu.memory_space<vmem>>, vector<8x32xf32>
    tpu.vector_store %arg7[%c0_23, %c0_24], %67 {strides = array<i32>} : memref<8x32xf32, #tpu.memory_space<vmem>>, vector<8x32xf32>,
    %c0_25 = arith.constant 0 : index
    %c0_26 = arith.constant 0 : index
    %73 = vector.load %arg8[%c0_25, %c0_26] : memref<8x32xf32, #tpu.memory_space<vmem>>, vector<8x32xf32>
    tpu.vector_store %arg8[%c0_25, %c0_26], %65 {strides = array<i32>} : memref<8x32xf32, #tpu.memory_space<vmem>>, vector<8x32xf32>,
    return
  }
  func.func @transform_0(%arg0: i32) -> (i32, i32) {
    %c0_i32 = arith.constant 0 : i32
    %c0_i32_0 = arith.constant 0 : i32
    %c0_i32_1 = arith.constant 0 : i32
    return %c0_i32, %c0_i32_0 : i32, i32
  }
  func.func @transform_1(%arg0: i32) -> (i32, i32) {
    %c0_i32 = arith.constant 0 : i32
    %c0_i32_0 = arith.constant 0 : i32
    %c0_i32_1 = arith.constant 0 : i32
    return %c0_i32, %c0_i32_0 : i32, i32
  }
  func.func @transform_2(%arg0: i32) -> (i32, i32) {
    %c0_i32 = arith.constant 0 : i32
    %c0_i32_0 = arith.constant 0 : i32
    %c0_i32_1 = arith.constant 0 : i32
    return %c0_i32, %c0_i32_0 : i32, i32
  }
  func.func @transform_3(%arg0: i32) -> (i32, i32) {
    %c0_i32 = arith.constant 0 : i32
    %c0_i32_0 = arith.constant 0 : i32
    %c0_i32_1 = arith.constant 0 : i32
    return %c0_i32, %c0_i32_0 : i32, i32
  }
  func.func @transform_4(%arg0: i32) -> (i32, i32) {
    %c0_i32 = arith.constant 0 : i32
    %c0_i32_0 = arith.constant 0 : i32
    %c0_i32_1 = arith.constant 0 : i32
    return %c0_i32, %c0_i32_0 : i32, i32
  }
  func.func @transform_5(%arg0: i32) -> (i32, i32) {
    %c0_i32 = arith.constant 0 : i32
    %c0_i32_0 = arith.constant 0 : i32
    %c0_i32_1 = arith.constant 0 : i32
    return %c0_i32, %c0_i32_0 : i32, i32
  }
  func.func @transform_6(%arg0: i32) -> (i32, i32) {
    %c0_i32 = arith.constant 0 : i32
    %c0_i32_0 = arith.constant 0 : i32
    %c0_i32_1 = arith.constant 0 : i32
    return %c0_i32, %c0_i32_0 : i32, i32
  }
  func.func @transform_7(%arg0: i32) -> (i32, i32) {
    %c0_i32 = arith.constant 0 : i32
    %c0_i32_0 = arith.constant 0 : i32
    %c0_i32_1 = arith.constant 0 : i32
    return %c0_i32, %c0_i32_0 : i32, i32
  }
  func.func @transform_8(%arg0: i32) -> (i32, i32, i32) {
    %c0_i32 = arith.constant 0 : i32
    %c0_i32_0 = arith.constant 0 : i32
    %c0_i32_1 = arith.constant 0 : i32
    %c0_i32_2 = arith.constant 0 : i32
    return %c0_i32, %c0_i32_0, %c0_i32_1 : i32, i32, i32
  }
}

</mosaic_0001>

<llo_original>
// kernel: tpu_custom_call.1
$region0: #{tpu_custom_call.1}
  #allocation0 [shape = 'u32[]', space=smem, size = 0x4, offset = 0x4, fixed_abs, tag = 'smem constant byte address 0x4 - core index']
  #allocation1 [shape = 'u32[144,128]{1,0:T(1,128)}', space=vmem, size = 0x12000, scoped, tag = 'internal scratch']
  %s0 = inlined_call_operand.hbm [shape: f32[8,32], index: 0, kind: input, shape index: {}]
  %s1 = inlined_call_operand.hbm [shape: f32[32,128], index: 1, kind: input, shape index: {}]
  %s2 = inlined_call_operand.hbm [shape: f32[32,128], index: 2, kind: input, shape index: {}]
  %s3 = inlined_call_operand.vmem [shape: f32[1,128], index: 3, kind: input, shape index: {}]
  %s4 = inlined_call_operand.hbm [shape: f32[8,32], index: 4, kind: input, shape index: {}]
  %s5 = inlined_call_operand.vmem [shape: f32[8,32], index: 5, kind: input, shape index: {}]
  %s6 = inlined_call_operand.hbm [shape: f32[8,32], index: 6, kind: output, shape index: {0}]
  %s7 = inlined_call_operand.hbm [shape: f32[8,32], index: 7, kind: output, shape index: {1}]
  %s8 = inlined_call_operand.hbm [shape: f32[3,8,32], index: 8, kind: output, shape index: {2}]
  %9 = xla_tuple %s6, %s7, %s8
  %s10 = sld [smem:[#allocation0]]
  $region66: #{tpu_custom_call.1} parent=0
    _
  %s12 = ssub.s32 1, %s10
  %s13 = scalar_select 0, %s12, %s10
  $region1: #{tpu_custom_call.1} parent=0
    #allocation2 [shape = 'u8[4096]{0}', space=vmem, size = 0x1000, scoped, tag = 'input window, operand 0, single buffered']
    #allocation3 [shape = 's32[1]{0}', space=sflag, size = 0x4, scoped, tag = 'scoped memory for tpu_custom_call.1']
    #allocation4 [shape = 's32[1]{0}', space=sflag, size = 0x4, scoped, tag = 'scoped memory for tpu_custom_call.1']
    #allocation5 [shape = 'u8[16384]{0}', space=vmem, size = 0x4000, scoped, tag = 'input window, operand 1, single buffered']
    #allocation6 [shape = 's32[1]{0}', space=sflag, size = 0x4, scoped, tag = 'scoped memory for tpu_custom_call.1']
    #allocation7 [shape = 'u8[16384]{0}', space=vmem, size = 0x4000, scoped, tag = 'input window, operand 2, single buffered']
    #allocation8 [shape = 'u8[4096]{0}', space=vmem, size = 0x1000, scoped, tag = 'input window, operand 4, single buffered']
    #allocation9 [shape = 's32[1]{0}', space=sflag, size = 0x4, scoped, tag = 'scoped memory for tpu_custom_call.1']
    #allocation10 [shape = 'u8[4096]{0}', space=vmem, size = 0x1000, scoped, tag = 'output window, operand 0, single buffered']
    #allocation11 [shape = 'u8[4096]{0}', space=vmem, size = 0x1000, scoped, tag = 'output window, operand 1, single buffered']
    #allocation12 [shape = 's32[1]{0}', space=sflag, size = 0x4, scoped, tag = 'scoped memory for tpu_custom_call.1']
    #allocation13 [shape = 'u8[12288]{0}', space=vmem, size = 0x3000, scoped, tag = 'output window, operand 2, single buffered']
    %14 = vsyncpa [#allocation3], 0
    %15 = vsyncpa [#allocation6], 0
    %16 = vsyncpa [#allocation9], 0
    %17 = vsyncpa [#allocation4], 0
    %18 = vsyncpa [#allocation12], 0
    // Predicated region
    $region2: #{tpu_custom_call.1} parent=1 // pred_check
      _
    $region3: #{tpu_custom_call.1} parent=1 // pred_check_branch
      %20 = sbr.rel (0) target = $region5
    $region4: #{tpu_custom_call.1} parent=1 // pred_region
      %s22 = ssub.s32 128, 128
      %23 = vsyncadd [#allocation3], %s22
      %s25 = sshll.u32 [#allocation2], 4
      %s26 = int_to_ptr.vmem [resolvable:$true] %s25
      %28 = dma.hbm_to_vmem [thread:$0]  %s0, 128, %s26, [#allocation3]
    $region5: #{tpu_custom_call.1} parent=1 // pred_fallthru
      _
    // Predicated region
    $region6: #{tpu_custom_call.1} parent=1 // pred_check
      _
    $region7: #{tpu_custom_call.1} parent=1 // pred_check_branch
      %30 = sbr.rel (0) target = $region9
    $region8: #{tpu_custom_call.1} parent=1 // pred_region
      %s32 = ssub.s32 512, 512
      %33 = vsyncadd [#allocation6], %s32
      %s34 = sshll.u32 [#allocation5], 4
      %s35 = int_to_ptr.vmem [resolvable:$true] %s34
      %40 = dma.hbm_to_vmem [thread:$0]  %s1, 512, %s35, [#allocation6], 128, 128, 8
    $region9: #{tpu_custom_call.1} parent=1 // pred_fallthru
      _
    // Predicated region
    $region10: #{tpu_custom_call.1} parent=1 // pred_check
      _
    $region11: #{tpu_custom_call.1} parent=1 // pred_check_branch
      %42 = sbr.rel (0) target = $region13
    $region12: #{tpu_custom_call.1} parent=1 // pred_region
      %s44 = ssub.s32 512, 512
      %45 = vsyncadd [#allocation6], %s44
      %s46 = sshll.u32 [#allocation7], 4
      %s47 = int_to_ptr.vmem [resolvable:$true] %s46
      %52 = dma.hbm_to_vmem [thread:$0]  %s2, 512, %s47, [#allocation6], 128, 128, 8
    $region13: #{tpu_custom_call.1} parent=1 // pred_fallthru
      _
    // Predicated region
    $region14: #{tpu_custom_call.1} parent=1 // pred_check
      _
    $region15: #{tpu_custom_call.1} parent=1 // pred_check_branch
      %54 = sbr.rel (0) target = $region17
    $region16: #{tpu_custom_call.1} parent=1 // pred_region
      _
    $region17: #{tpu_custom_call.1} parent=1 // pred_fallthru
      _
    // Predicated region
    $region18: #{tpu_custom_call.1} parent=1 // pred_check
      _
    $region19: #{tpu_custom_call.1} parent=1 // pred_check_branch
      %56 = sbr.rel (0) target = $region21
    $region20: #{tpu_custom_call.1} parent=1 // pred_region
      %s58 = ssub.s32 128, 128
      %59 = vsyncadd [#allocation9], %s58
      %s61 = sshll.u32 [#allocation8], 4
      %s62 = int_to_ptr.vmem [resolvable:$true] %s61
      %64 = dma.hbm_to_vmem [thread:$0]  %s4, 128, %s62, [#allocation9]
    $region21: #{tpu_custom_call.1} parent=1 // pred_fallthru
      _
    // Predicated region
    $region22: #{tpu_custom_call.1} parent=1 // pred_check
      _
    $region23: #{tpu_custom_call.1} parent=1 // pred_check_branch
      %66 = sbr.rel (0) target = $region25
    $region24: #{tpu_custom_call.1} parent=1 // pred_region
      _
    $region25: #{tpu_custom_call.1} parent=1 // pred_fallthru
      _
    // Predicated region
    $region26: #{tpu_custom_call.1} parent=1 // pred_check
      _
    $region27: #{tpu_custom_call.1} parent=1 // pred_check_branch
      %68 = sbr.rel (0) target = $region29
    $region28: #{tpu_custom_call.1} parent=1 // pred_region
      %69 = dma.done [#allocation3], 128
    $region29: #{tpu_custom_call.1} parent=1 // pred_fallthru
      _
    // Predicated region
    $region30: #{tpu_custom_call.1} parent=1 // pred_check
      _
    $region31: #{tpu_custom_call.1} parent=1 // pred_check_branch
      %71 = sbr.rel (0) target = $region33
    $region32: #{tpu_custom_call.1} parent=1 // pred_region
      %72 = dma.done [#allocation6], 512
    $region33: #{tpu_custom_call.1} parent=1 // pred_fallthru
      _
    // Predicated region
    $region34: #{tpu_custom_call.1} parent=1 // pred_check
      _
    $region35: #{tpu_custom_call.1} parent=1 // pred_check_branch
      %74 = sbr.rel (0) target = $region37
    $region36: #{tpu_custom_call.1} parent=1 // pred_region
      %75 = dma.done [#allocation6], 512
    $region37: #{tpu_custom_call.1} parent=1 // pred_fallthru
      _
    // Predicated region
    $region38: #{tpu_custom_call.1} parent=1 // pred_check
      _
    $region39: #{tpu_custom_call.1} parent=1 // pred_check_branch
      %77 = sbr.rel (0) target = $region41
    $region40: #{tpu_custom_call.1} parent=1 // pred_region
      %78 = dma.done [#allocation9], 128
    $region41: #{tpu_custom_call.1} parent=1 // pred_fallthru
      _
    %v79 = vld [vmem:[#allocation2] sm:$0xff]
    %v80 = vld [vmem:[#allocation5] sm:$0xff]
    %v81 = vld [vmem:[#allocation5 + $0x8] sm:$0xff]
    %v82 = vld [vmem:[#allocation5 + $0x10] sm:$0xff]
    %v83 = vld [vmem:[#allocation5 + $0x18] sm:$0xff]
    %v84 = vld [vmem:[%s3] sm:$0x1]
    %v86 = vlaneseq
    %v87 = vshrl.u32 %v86, 7
    %v88 = vsub.s32 0, %v87
    %v89 = vrot.slane %v84, %v88
    %vm91 = vcmask 261120
    %v93 = vsel %vm91, %v79, 0
    %95 = vmatprep.subr.mxu0 0.0
    %96 = vmatpush1.msra.mxu0 0.0
    %97 = vmatprep.subr.mxu0 0.0
    %98 = vmatpush1.msra.mxu0 0.0
    %99 = vmatprep.subr.mxu0 0.0
    %100 = vmatpush1.msra.mxu0 0.0
    %101 = vmatprep.subr.mxu0 0.0
    %102 = vmatpush1.msra.mxu0 0.0
    %103 = vmatprep.subr.mxu0 0.0
    %104 = vmatpush1.msra.mxu0 0.0
    %105 = vmatprep.subr.mxu0 0.0
    %106 = vmatpush1.msra.mxu0 0.0
    %107 = vmatprep.subr.mxu0 0.0
    %108 = vmatpush1.msra.mxu0 0.0
    %109 = vmatprep.subr.mxu0 0.0
    %110 = vmatpush1.msra.mxu0 0.0
    %111 = vmatprep.subr.mxu0 0.0
    %112 = vmatpush1.msra.mxu0 0.0
    %113 = vmatprep.subr.mxu0 0.0
    %114 = vmatpush1.msra.mxu0 0.0
    %115 = vmatprep.subr.mxu0 0.0
    %116 = vmatpush1.msra.mxu0 0.0
    %117 = vmatprep.subr.mxu0 0.0
    %118 = vmatpush1.msra.mxu0 0.0
    %119 = vmatprep.subr.mxu0 0.0
    %120 = vmatpush1.msra.mxu0 %v83
    %121 = vmatprep.subr.mxu0 0.0
    %122 = vmatpush1.msra.mxu0 %v82
    %123 = vmatprep.subr.mxu0 0.0
    %124 = vmatpush1.msra.mxu0 %v81
    %125 = vmatprep.subr.mxu0 0.0
    %126 = vmatpush1.msra.mxu0 %v80
    %127 = vmatprep.subr.mxu0 0.0
    %128 = vmatpush2.msra.mxu0 0.0
    %129 = vmatprep.subr.mxu0 0.0
    %130 = vmatpush2.msra.mxu0 0.0
    %131 = vmatprep.subr.mxu0 0.0
    %132 = vmatpush2.msra.mxu0 0.0
    %133 = vmatprep.subr.mxu0 0.0
    %134 = vmatpush2.msra.mxu0 0.0
    %135 = vmatprep.subr.mxu0 0.0
    %136 = vmatpush2.msra.mxu0 0.0
    %137 = vmatprep.subr.mxu0 0.0
    %138 = vmatpush2.msra.mxu0 0.0
    %139 = vmatprep.subr.mxu0 0.0
    %140 = vmatpush2.msra.mxu0 0.0
    %141 = vmatprep.subr.mxu0 0.0
    %142 = vmatpush2.msra.mxu0 0.0
    %143 = vmatprep.subr.mxu0 0.0
    %144 = vmatpush2.msra.mxu0 0.0
    %145 = vmatprep.subr.mxu0 0.0
    %146 = vmatpush2.msra.mxu0 0.0
    %147 = vmatprep.subr.mxu0 0.0
    %148 = vmatpush2.msra.mxu0 0.0
    %149 = vmatprep.subr.mxu0 0.0
    %150 = vmatpush2.msra.mxu0 0.0
    %151 = vmatprep.subr.mxu0 0.0
    %152 = vmatpush2.msra.mxu0 0.0
    %153 = vmatprep.subr.mxu0 0.0
    %154 = vmatpush2.msra.mxu0 0.0
    %155 = vmatprep.subr.mxu0 0.0
    %156 = vmatpush2.msra.mxu0 0.0
    %157 = vmatprep.subr.mxu0 0.0
    %158 = vmatpush2.msra.mxu0 0.0
    %159 = vmatprep.mubr.f32.mxu0 0.0
    %160 = vmatmul.mubr.f32.gmra.mxu0 %v93
    %v161 = vpop.f32.mrf.mxu0
    %v162 = vadd.f32 %v89, %v161
    %v163 = vpop.f32.mrf.mxu0
    %164 = vdwg.mxu0
    %v165 = vld [vmem:[#allocation7] sm:$0xff]
    %v166 = vld [vmem:[#allocation7 + $0x8] sm:$0xff]
    %v167 = vld [vmem:[#allocation7 + $0x10] sm:$0xff]
    %v168 = vld [vmem:[#allocation7 + $0x18] sm:$0xff]
    %v169 = vld [vmem:[#allocation8] sm:$0xff]
    %v170 = vld [vmem:[%s5] sm:$0xff]
    %v172 = vsel %vm91, %v169, 0
    %174 = vmatprep.subr.mxu0 0.0
    %175 = vmatpush1.msra.mxu0 0.0
    %176 = vmatprep.subr.mxu0 0.0
    %177 = vmatpush1.msra.mxu0 0.0
    %178 = vmatprep.subr.mxu0 0.0
    %179 = vmatpush1.msra.mxu0 0.0
    %180 = vmatprep.subr.mxu0 0.0
    %181 = vmatpush1.msra.mxu0 0.0
    %182 = vmatprep.subr.mxu0 0.0
    %183 = vmatpush1.msra.mxu0 0.0
    %184 = vmatprep.subr.mxu0 0.0
    %185 = vmatpush1.msra.mxu0 0.0
    %186 = vmatprep.subr.mxu0 0.0
    %187 = vmatpush1.msra.mxu0 0.0
    %188 = vmatprep.subr.mxu0 0.0
    %189 = vmatpush1.msra.mxu0 0.0
    %190 = vmatprep.subr.mxu0 0.0
    %191 = vmatpush1.msra.mxu0 0.0
    %192 = vmatprep.subr.mxu0 0.0
    %193 = vmatpush1.msra.mxu0 0.0
    %194 = vmatprep.subr.mxu0 0.0
    %195 = vmatpush1.msra.mxu0 0.0
    %196 = vmatprep.subr.mxu0 0.0
    %197 = vmatpush1.msra.mxu0 0.0
    %198 = vmatprep.subr.mxu0 0.0
    %199 = vmatpush1.msra.mxu0 %v168
    %200 = vmatprep.subr.mxu0 0.0
    %201 = vmatpush1.msra.mxu0 %v167
    %202 = vmatprep.subr.mxu0 0.0
    %203 = vmatpush1.msra.mxu0 %v166
    %204 = vmatprep.subr.mxu0 0.0
    %205 = vmatpush1.msra.mxu0 %v165
    %206 = vmatprep.subr.mxu0 0.0
    %207 = vmatpush2.msra.mxu0 0.0
    %208 = vmatprep.subr.mxu0 0.0
    %209 = vmatpush2.msra.mxu0 0.0
    %210 = vmatprep.subr.mxu0 0.0
    %211 = vmatpush2.msra.mxu0 0.0
    %212 = vmatprep.subr.mxu0 0.0
    %213 = vmatpush2.msra.mxu0 0.0
    %214 = vmatprep.subr.mxu0 0.0
    %215 = vmatpush2.msra.mxu0 0.0
    %216 = vmatprep.subr.mxu0 0.0
    %217 = vmatpush2.msra.mxu0 0.0
    %218 = vmatprep.subr.mxu0 0.0
    %219 = vmatpush2.msra.mxu0 0.0
    %220 = vmatprep.subr.mxu0 0.0
    %221 = vmatpush2.msra.mxu0 0.0
    %222 = vmatprep.subr.mxu0 0.0
    %223 = vmatpush2.msra.mxu0 0.0
    %224 = vmatprep.subr.mxu0 0.0
    %225 = vmatpush2.msra.mxu0 0.0
    %226 = vmatprep.subr.mxu0 0.0
    %227 = vmatpush2.msra.mxu0 0.0
    %228 = vmatprep.subr.mxu0 0.0
    %229 = vmatpush2.msra.mxu0 0.0
    %230 = vmatprep.subr.mxu0 0.0
    %231 = vmatpush2.msra.mxu0 0.0
    %232 = vmatprep.subr.mxu0 0.0
    %233 = vmatpush2.msra.mxu0 0.0
    %234 = vmatprep.subr.mxu0 0.0
    %235 = vmatpush2.msra.mxu0 0.0
    %236 = vmatprep.subr.mxu0 0.0
    %237 = vmatpush2.msra.mxu0 0.0
    %238 = vmatprep.mubr.f32.mxu0 0.0
    %239 = vmatmul.mubr.f32.gmra.mxu0 %v172
    %v240 = vpop.f32.mrf.mxu0
    %v241 = vadd.f32 0.0, %v240
    %v242 = vpop.f32.mrf.mxu0
    %243 = vdwg.mxu0
    %v244 = vadd.f32 %v162, %v241
    %v245 = vxor.u32 %v244, 2147483648
    %v246 = vmul.f32 %v245, 1.442695
    %v247 = vpow.pop %v246
    %v248 = vadd.f32 %v247, 1.0
    %v249 = vrcp.pop %v248
    %v250 = vmul.f32 1.0, %v249
    %v251 = vtanh.pop %v244
    %253 = vrot.lane.b32.xlu0 %v170, 32
    %v254 = vpop.permute.xlu0 %253
    %v256 = vmul.f32 %v250, %v254
    %258 = vrot.lane.b32.xlu0 %v251, 64
    %v259 = vpop.permute.xlu0 %258
    %v261 = vmul.f32 %v250, %v259
    %263 = vrot.lane.b32.xlu0 %v261, 32
    %v264 = vpop.permute.xlu0 %263
    %v266 = vadd.f32 %v256, %v264
    %v267 = vtanh.pop %v266
    %269 = vrot.lane.b32.xlu0 %v267, 64
    %v270 = vpop.permute.xlu0 %269
    %v272 = vmul.f32 %v250, %v270
    %274 = vrot.lane.b32.xlu0 %v272, 32
    %v275 = vpop.permute.xlu0 %274
    %277 = vst.msk [vmem:[#allocation13] sm:$0xff] %vm91, %v275
    %v278 = vsel %vm91, %v275, 0
    %280 = vmatprep.subr.mxu0 0.0
    %281 = vmatpush1.msra.mxu0 0.0
    %282 = vmatprep.subr.mxu0 0.0
    %283 = vmatpush1.msra.mxu0 0.0
    %284 = vmatprep.subr.mxu0 0.0
    %285 = vmatpush1.msra.mxu0 0.0
    %286 = vmatprep.subr.mxu0 0.0
    %287 = vmatpush1.msra.mxu0 0.0
    %288 = vmatprep.subr.mxu0 0.0
    %289 = vmatpush1.msra.mxu0 0.0
    %290 = vmatprep.subr.mxu0 0.0
    %291 = vmatpush1.msra.mxu0 0.0
    %292 = vmatprep.subr.mxu0 0.0
    %293 = vmatpush1.msra.mxu0 0.0
    %294 = vmatprep.subr.mxu0 0.0
    %295 = vmatpush1.msra.mxu0 0.0
    %296 = vmatprep.subr.mxu0 0.0
    %297 = vmatpush1.msra.mxu0 0.0
    %298 = vmatprep.subr.mxu0 0.0
    %299 = vmatpush1.msra.mxu0 0.0
    %300 = vmatprep.subr.mxu0 0.0
    %301 = vmatpush1.msra.mxu0 0.0
    %302 = vmatprep.subr.mxu0 0.0
    %303 = vmatpush1.msra.mxu0 0.0
    %304 = vmatprep.subr.mxu0 0.0
    %305 = vmatpush1.msra.mxu0 %v168
    %306 = vmatprep.subr.mxu0 0.0
    %307 = vmatpush1.msra.mxu0 %v167
    %308 = vmatprep.subr.mxu0 0.0
    %309 = vmatpush1.msra.mxu0 %v166
    %310 = vmatprep.subr.mxu0 0.0
    %311 = vmatpush1.msra.mxu0 %v165
    %312 = vmatprep.subr.mxu0 0.0
    %313 = vmatpush2.msra.mxu0 0.0
    %314 = vmatprep.subr.mxu0 0.0
    %315 = vmatpush2.msra.mxu0 0.0
    %316 = vmatprep.subr.mxu0 0.0
    %317 = vmatpush2.msra.mxu0 0.0
    %318 = vmatprep.subr.mxu0 0.0
    %319 = vmatpush2.msra.mxu0 0.0
    %320 = vmatprep.subr.mxu0 0.0
    %321 = vmatpush2.msra.mxu0 0.0
    %322 = vmatprep.subr.mxu0 0.0
    %323 = vmatpush2.msra.mxu0 0.0
    %324 = vmatprep.subr.mxu0 0.0
    %325 = vmatpush2.msra.mxu0 0.0
    %326 = vmatprep.subr.mxu0 0.0
    %327 = vmatpush2.msra.mxu0 0.0
    %328 = vmatprep.subr.mxu0 0.0
    %329 = vmatpush2.msra.mxu0 0.0
    %330 = vmatprep.subr.mxu0 0.0
    %331 = vmatpush2.msra.mxu0 0.0
    %332 = vmatprep.subr.mxu0 0.0
    %333 = vmatpush2.msra.mxu0 0.0
    %334 = vmatprep.subr.mxu0 0.0
    %335 = vmatpush2.msra.mxu0 0.0
    %336 = vmatprep.subr.mxu0 0.0
    %337 = vmatpush2.msra.mxu0 0.0
    %338 = vmatprep.subr.mxu0 0.0
    %339 = vmatpush2.msra.mxu0 0.0
    %340 = vmatprep.subr.mxu0 0.0
    %341 = vmatpush2.msra.mxu0 0.0
    %342 = vmatprep.subr.mxu0 0.0
    %343 = vmatpush2.msra.mxu0 0.0
    %344 = vmatprep.mubr.f32.mxu0 0.0
    %345 = vmatmul.mubr.f32.gmra.mxu0 %v278
    %v346 = vpop.f32.mrf.mxu0
    %v347 = vadd.f32 0.0, %v346
    %v348 = vpop.f32.mrf.mxu0
    %349 = vdwg.mxu0
    %v350 = vadd.f32 %v162, %v347
    %v351 = vxor.u32 %v350, 2147483648
    %v352 = vmul.f32 %v351, 1.442695
    %v353 = vpow.pop %v352
    %v354 = vadd.f32 %v353, 1.0
    %v355 = vrcp.pop %v354
    %v356 = vmul.f32 1.0, %v355
    %v357 = vtanh.pop %v350
    %v358 = vmul.f32 %v356, %v266
    %360 = vrot.lane.b32.xlu0 %v357, 64
    %v361 = vpop.permute.xlu0 %360
    %v363 = vmul.f32 %v356, %v361
    %365 = vrot.lane.b32.xlu0 %v363, 32
    %v366 = vpop.permute.xlu0 %365
    %v368 = vadd.f32 %v358, %v366
    %v369 = vtanh.pop %v368
    %371 = vrot.lane.b32.xlu0 %v369, 64
    %v372 = vpop.permute.xlu0 %371
    %v374 = vmul.f32 %v356, %v372
    %376 = vrot.lane.b32.xlu0 %v374, 32
    %v377 = vpop.permute.xlu0 %376
    %s379 = scalar_lea.vmem [#allocation13], 8
    %380 = vst.msk [vmem:[%s379] sm:$0xff] %vm91, %v377
    %v381 = vsel %vm91, %v377, 0
    %383 = vmatprep.subr.mxu0 0.0
    %384 = vmatpush1.msra.mxu0 0.0
    %385 = vmatprep.subr.mxu0 0.0
    %386 = vmatpush1.msra.mxu0 0.0
    %387 = vmatprep.subr.mxu0 0.0
    %388 = vmatpush1.msra.mxu0 0.0
    %389 = vmatprep.subr.mxu0 0.0
    %390 = vmatpush1.msra.mxu0 0.0
    %391 = vmatprep.subr.mxu0 0.0
    %392 = vmatpush1.msra.mxu0 0.0
    %393 = vmatprep.subr.mxu0 0.0
    %394 = vmatpush1.msra.mxu0 0.0
    %395 = vmatprep.subr.mxu0 0.0
    %396 = vmatpush1.msra.mxu0 0.0
    %397 = vmatprep.subr.mxu0 0.0
    %398 = vmatpush1.msra.mxu0 0.0
    %399 = vmatprep.subr.mxu0 0.0
    %400 = vmatpush1.msra.mxu0 0.0
    %401 = vmatprep.subr.mxu0 0.0
    %402 = vmatpush1.msra.mxu0 0.0
    %403 = vmatprep.subr.mxu0 0.0
    %404 = vmatpush1.msra.mxu0 0.0
    %405 = vmatprep.subr.mxu0 0.0
    %406 = vmatpush1.msra.mxu0 0.0
    %407 = vmatprep.subr.mxu0 0.0
    %408 = vmatpush1.msra.mxu0 %v168
    %409 = vmatprep.subr.mxu0 0.0
    %410 = vmatpush1.msra.mxu0 %v167
    %411 = vmatprep.subr.mxu0 0.0
    %412 = vmatpush1.msra.mxu0 %v166
    %413 = vmatprep.subr.mxu0 0.0
    %414 = vmatpush1.msra.mxu0 %v165
    %415 = vmatprep.subr.mxu0 0.0
    %416 = vmatpush2.msra.mxu0 0.0
    %417 = vmatprep.subr.mxu0 0.0
    %418 = vmatpush2.msra.mxu0 0.0
    %419 = vmatprep.subr.mxu0 0.0
    %420 = vmatpush2.msra.mxu0 0.0
    %421 = vmatprep.subr.mxu0 0.0
    %422 = vmatpush2.msra.mxu0 0.0
    %423 = vmatprep.subr.mxu0 0.0
    %424 = vmatpush2.msra.mxu0 0.0
    %425 = vmatprep.subr.mxu0 0.0
    %426 = vmatpush2.msra.mxu0 0.0
    %427 = vmatprep.subr.mxu0 0.0
    %428 = vmatpush2.msra.mxu0 0.0
    %429 = vmatprep.subr.mxu0 0.0
    %430 = vmatpush2.msra.mxu0 0.0
    %431 = vmatprep.subr.mxu0 0.0
    %432 = vmatpush2.msra.mxu0 0.0
    %433 = vmatprep.subr.mxu0 0.0
    %434 = vmatpush2.msra.mxu0 0.0
    %435 = vmatprep.subr.mxu0 0.0
    %436 = vmatpush2.msra.mxu0 0.0
    %437 = vmatprep.subr.mxu0 0.0
    %438 = vmatpush2.msra.mxu0 0.0
    %439 = vmatprep.subr.mxu0 0.0
    %440 = vmatpush2.msra.mxu0 0.0
    %441 = vmatprep.subr.mxu0 0.0
    %442 = vmatpush2.msra.mxu0 0.0
    %443 = vmatprep.subr.mxu0 0.0
    %444 = vmatpush2.msra.mxu0 0.0
    %445 = vmatprep.subr.mxu0 0.0
    %446 = vmatpush2.msra.mxu0 0.0
    %447 = vmatprep.mubr.f32.mxu0 0.0
    %448 = vmatmul.mubr.f32.gmra.mxu0 %v381
    %v449 = vpop.f32.mrf.mxu0
    %v450 = vadd.f32 0.0, %v449
    %v451 = vpop.f32.mrf.mxu0
    %452 = vdwg.mxu0
    %v453 = vadd.f32 %v162, %v450
    %v454 = vxor.u32 %v453, 2147483648
    %v455 = vmul.f32 %v454, 1.442695
    %v456 = vpow.pop %v455
    %v457 = vadd.f32 %v456, 1.0
    %v458 = vrcp.pop %v457
    %v459 = vmul.f32 1.0, %v458
    %v460 = vtanh.pop %v453
    %v461 = vmul.f32 %v459, %v368
    %463 = vrot.lane.b32.xlu0 %v460, 64
    %v464 = vpop.permute.xlu0 %463
    %v466 = vmul.f32 %v459, %v464
    %468 = vrot.lane.b32.xlu0 %v466, 32
    %v469 = vpop.permute.xlu0 %468
    %v471 = vadd.f32 %v461, %v469
    %v472 = vtanh.pop %v471
    %474 = vrot.lane.b32.xlu0 %v472, 64
    %v475 = vpop.permute.xlu0 %474
    %v477 = vmul.f32 %v459, %v475
    %479 = vrot.lane.b32.xlu0 %v477, 32
    %v480 = vpop.permute.xlu0 %479
    %s482 = scalar_lea.vmem [#allocation13], 16
    %483 = vst.msk [vmem:[%s482] sm:$0xff] %vm91, %v480
    %484 = vst.msk [vmem:[#allocation10] sm:$0xff] %vm91, %v480
    %486 = vrot.lane.b32.xlu0 %v471, 96
    %v487 = vpop.permute.xlu0 %486
    %489 = vst.msk [vmem:[#allocation11] sm:$0xff] %vm91, %v487
    // Predicated region
    $region42: #{tpu_custom_call.1} parent=1 // pred_check
      _
    $region43: #{tpu_custom_call.1} parent=1 // pred_check_branch
      %491 = sbr.rel (0) target = $region45
    $region44: #{tpu_custom_call.1} parent=1 // pred_region
      %s493 = ssub.s32 128, 128
      %494 = vsyncadd [#allocation4], %s493
      %s496 = sshll.u32 [#allocation10], 4
      %s497 = int_to_ptr.vmem [resolvable:$true] %s496
      %499 = dma.vmem_to_hbm [thread:$0]  %s497, 128, %s6, [#allocation4]
    $region45: #{tpu_custom_call.1} parent=1 // pred_fallthru
      _
    // Predicated region
    $region46: #{tpu_custom_call.1} parent=1 // pred_check
      _
    $region47: #{tpu_custom_call.1} parent=1 // pred_check_branch
      %501 = sbr.rel (0) target = $region49
    $region48: #{tpu_custom_call.1} parent=1 // pred_region
      %s503 = ssub.s32 128, 128
      %504 = vsyncadd [#allocation12], %s503
      %s506 = sshll.u32 [#allocation11], 4
      %s507 = int_to_ptr.vmem [resolvable:$true] %s506
      %509 = dma.vmem_to_hbm [thread:$0]  %s507, 128, %s7, [#allocation12]
    $region49: #{tpu_custom_call.1} parent=1 // pred_fallthru
      _
    // Predicated region
    $region50: #{tpu_custom_call.1} parent=1 // pred_check
      _
    $region51: #{tpu_custom_call.1} parent=1 // pred_check_branch
      %511 = sbr.rel (0) target = $region53
    $region52: #{tpu_custom_call.1} parent=1 // pred_region
      %s513 = ssub.s32 384, 384
      %514 = vsyncadd [#allocation12], %s513
      %s515 = sshll.u32 [#allocation13], 4
      %s516 = int_to_ptr.vmem [resolvable:$true] %s515
      %521 = dma.vmem_to_hbm [thread:$0]  %s516, 384, %s8, [#allocation12], 128, 128, 8
    $region53: #{tpu_custom_call.1} parent=1 // pred_fallthru
      _
    // Predicated region
    $region54: #{tpu_custom_call.1} parent=1 // pred_check
      _
    $region55: #{tpu_custom_call.1} parent=1 // pred_check_branch
      %523 = sbr.rel (0) target = $region57
    $region56: #{tpu_custom_call.1} parent=1 // pred_region
      %524 = dma.done [#allocation4], 128
    $region57: #{tpu_custom_call.1} parent=1 // pred_fallthru
      _
    // Predicated region
    $region58: #{tpu_custom_call.1} parent=1 // pred_check
      _
    $region59: #{tpu_custom_call.1} parent=1 // pred_check_branch
      %526 = sbr.rel (0) target = $region61
    $region60: #{tpu_custom_call.1} parent=1 // pred_region
      %527 = dma.done [#allocation12], 128
    $region61: #{tpu_custom_call.1} parent=1 // pred_fallthru
      _
    // Predicated region
    $region62: #{tpu_custom_call.1} parent=1 // pred_check
      _
    $region63: #{tpu_custom_call.1} parent=1 // pred_check_branch
      %529 = sbr.rel (0) target = $region65
    $region64: #{tpu_custom_call.1} parent=1 // pred_region
      %530 = dma.done [#allocation12], 384
    $region65: #{tpu_custom_call.1} parent=1 // pred_fallthru
      _
    %531 = vsyncpa [#allocation3], 1
    %532 = vsyncpa [#allocation6], 1
    %533 = vsyncpa [#allocation9], 1
    %534 = vsyncpa [#allocation4], 1
    %535 = vsyncpa [#allocation12], 1

</llo_original>
